<compile_context>
chip_gen: v6e
topology: v6e:2x2x1
jax: 0.10.0
libtpu: 0.0.40
codegen_flags: <defaults>
</compile_context>

<pallas_src>
import functools

import jax
import jax.numpy as jnp
from jax import lax
from jax.experimental import pallas as pl
from jax.experimental.pallas import tpu as pltpu


def _augmented_repr_kernel(obj_ref, pix_ref, out_ref, m_ref, l_ref, acc_ref,
                           *, hw_total, t_hw, sub, mm_dtype):
    """One (batch-block, spatial-tile) grid step of online-softmax attention.

    obj_ref: (nb, K, C)   pix_ref: (nb, C, t_hw)   out_ref: (nb, K, C)
    m_ref/l_ref: (nb, K, 1) running max / sum      acc_ref: (nb, K, C) running ctx
    """
    s = pl.program_id(1)
    num_s = pl.num_programs(1)

    @pl.when(s == 0)
    def _init():
        m_ref[...] = jnp.full_like(m_ref, -jnp.inf)
        l_ref[...] = jnp.zeros_like(l_ref)
        acc_ref[...] = jnp.zeros_like(acc_ref)

    q = obj_ref[...]                                      # (nb, K, C)
    c = q.shape[-1]
    # Fold the 1/sqrt(C) scale into the small query tile (K*C mults, not K*HW),
    # and cast the MXU operand once (bf16 on v7x keeps the fast MXU path).
    q_mm = (q * (1.0 / (c ** 0.5))).astype(mm_dtype)

    ragged = (hw_total % t_hw) != 0
    n_sub = t_hw // sub                                   # sub divides t_hw (or == t_hw)

    m_run = m_ref[...]
    l_run = l_ref[...]
    acc_run = acc_ref[...]

    # Statically-unrolled inner loop over <=1024-lane sub-blocks of the resident
    # pix tile: keeps the (K, sub) sim/p temporaries to a handful of vregs while
    # the DMA block stays large.  Static slices of a VMEM ref are free views;
    # per-iteration temporaries die immediately, so this is the fully-unrolled
    # equivalent of lax.fori_loop(..., unroll=True) without dynamic lane slicing.
    for j in range(n_sub):
        lo = j * sub
        x = pix_ref[:, :, lo:lo + sub]                    # (nb, C, sub)
        if ragged:
            col = s * t_hw + lo + lax.broadcasted_iota(jnp.int32, (1, 1, sub), 2)
            valid = col < hw_total
            # Zero padded columns: the ragged last block's tail is undefined
            # data, and 0 * NaN would poison the p @ x matmul otherwise.
            x = jnp.where(valid, x, 0)
        x_mm = x.astype(mm_dtype)

        # Similarity on the MXU (batched NN contraction, no transposes).
        sim = jnp.einsum("bkc,bcl->bkl", q_mm, x_mm,
                         preferred_element_type=jnp.float32)   # (nb, K, sub) f32
        if ragged:
            sim = jnp.where(valid, sim, -jnp.inf)

        # Online softmax update (carried in vregs; refs written once per tile).
        m_new = jnp.maximum(m_run, jnp.max(sim, axis=-1, keepdims=True))
        alpha = jnp.exp(m_run - m_new)                    # (nb, K, 1)
        p = jnp.exp(sim - m_new)                          # (nb, K, sub) f32
        l_run = alpha * l_run + jnp.sum(p, axis=-1, keepdims=True)

        # Context accumulation (batched NT contraction over the lane axis).
        ctx_upd = jnp.einsum("bkl,bcl->bkc", p.astype(mm_dtype), x_mm,
                             preferred_element_type=jnp.float32)  # (nb, K, C)
        acc_run = alpha * acc_run + ctx_upd
        m_run = m_new

    m_ref[...] = m_run
    l_ref[...] = l_run
    acc_ref[...] = acc_run

    @pl.when(s == num_s - 1)
    def _finalize():
        # Exact normalization: runs once per batch block on (nb, K, 1) values,
        # so there is nothing to gain from the approximate reciprocal.
        ctx = acc_ref[...] / l_ref[...]                   # (nb, K, C)
        out_ref[...] = (q.astype(jnp.float32) + ctx).astype(out_ref.dtype)


def augmented_representations(obj, pix, *, spatial_tile=None, batch_block=None,
                              matmul_dtype=None, vmem_limit_bytes=None):
    """obj: (N, C, K, 1), pix: (N, C, H, W) -> (N, C, K, 1)."""
    N, C, K, one = obj.shape
    assert one == 1
    Np, Cp, H, W = pix.shape
    assert (Np, Cp) == (N, C)
    HW = H * W
    itemsize = jnp.dtype(pix.dtype).itemsize

    TARGET = 16 << 20        # pix bytes per grid step (single buffer; 2x double-buffered)
    SUB_MAX = 1024           # in-kernel lane sub-block: bounds sim/p vreg pressure

    # ---- spatial tile: as big as the per-step DMA budget allows. ------------
    if spatial_tile is not None:
        t_hw = int(spatial_tile)
        if t_hw >= HW:
            t_hw = HW
        else:
            assert t_hw % 128 == 0, "spatial tile must be a multiple of 128"
    else:
        if HW <= SUB_MAX:
            t_hw = HW                               # single tile == full dim
        else:
            cap_lanes = max(512, ((TARGET // (C * itemsize)) // 512) * 512)
            if HW <= cap_lanes and HW % 512 == 0:
                t_hw = HW
            else:
                t_hw = min(cap_lanes, (HW // 512) * 512)
    num_s = pl.cdiv(HW, t_hw)                       # ragged last tile handled in-kernel

    # ---- in-kernel sub-block size (must divide t_hw, else one big block). ---
    if t_hw <= SUB_MAX:
        sub = t_hw
    else:
        sub = next((cnd for cnd in (1024, 512, 256, 128) if t_hw % cnd == 0), t_hw)

    # ---- batch block: amortize per-grid-step overhead at small HW, but keep
    #      >= 2 entries on the "parallel" batch axis so both v7x TCs are used. -
    if batch_block is None:
        per_n = C * t_hw * itemsize
        want = max(1, TARGET // per_n)
        if N >= 2:
            want = min(want, N // 2)
        want = int(min(want, N))
        nb = max(d for d in range(1, want + 1) if N % d == 0)
    else:
        nb = int(batch_block)
        assert N % nb == 0
    # TODO(synk): for N == 1 on v7x, split the spatial axis into a leading 2-way
    # "parallel" dim (partial m/l/acc per half + tiny combine epilogue) so both
    # TensorCores contribute HBM bandwidth.

    mm_dtype = (jnp.dtype(matmul_dtype) if matmul_dtype is not None
                else jnp.dtype(pix.dtype))

    # ---- auto VMEM budget: sized from the chosen blocks, clamped per chip. --
    if vmem_limit_bytes is None:
        pix_block = nb * C * t_hw * itemsize
        obj_block = nb * K * C * jnp.dtype(obj.dtype).itemsize
        out_block = obj_block
        scratch = nb * K * (C + 2) * 4
        needed = 2 * (pix_block + obj_block + out_block) + scratch
        limit = int(needed * 3 // 2) + (8 << 20)    # headroom for compiler temporaries
        limit = max(limit, 32 << 20)
        try:
            cap = int(getattr(pltpu.get_tpu_info(), "vmem_capacity_bytes", 0)) or (64 << 20)
        except Exception:
            cap = 64 << 20
        vmem_limit_bytes = min(limit, (cap * 3) // 4)   # ~48 MiB on v7x, more on v5e/v6e

    # Layout plumbing (tiny tensors, plain JAX): obj as (N, K, C) so the kernel
    # needs no in-kernel transposes and its output store is lane-dense along C.
    obj_kc = jnp.swapaxes(obj.reshape(N, C, K), 1, 2)      # (N, K, C)
    pix3 = pix.reshape(N, C, HW)                           # NO pad: ragged last block masked

    kernel = functools.partial(_augmented_repr_kernel, hw_total=HW, t_hw=t_hw,
                               sub=sub, mm_dtype=mm_dtype)

    out_kc = pl.pallas_call(
        kernel,
        out_shape=jax.ShapeDtypeStruct((N, K, C), obj.dtype),
        grid_spec=pltpu.PrefetchScalarGridSpec(
            num_scalar_prefetch=0,
            grid=(N // nb, num_s),
            in_specs=[
                pl.BlockSpec((nb, K, C), lambda n, s: (n, 0, 0)),
                pl.BlockSpec((nb, C, t_hw), lambda n, s: (n, 0, s)),
            ],
            out_specs=pl.BlockSpec((nb, K, C), lambda n, s: (n, 0, 0)),
            scratch_shapes=[
                pltpu.VMEM((nb, K, 1), jnp.float32),   # running max
                pltpu.VMEM((nb, K, 1), jnp.float32),   # running sum
                pltpu.VMEM((nb, K, C), jnp.float32),   # running context
            ],
        ),
        compiler_params=pltpu.CompilerParams(
            dimension_semantics=("parallel", "arbitrary"),
            vmem_limit_bytes=int(vmem_limit_bytes),
        ),
    )(obj_kc, pix3)

    return jnp.swapaxes(out_kc, 1, 2).reshape(N, C, K, 1)


def _reference(obj, pix):
    """Pure-JAX reference of the assumed forward semantics."""
    N, C, K, _ = obj.shape
    HW = pix.shape[2] * pix.shape[3]
    q = obj.reshape(N, C, K).astype(jnp.float32)
    x = pix.reshape(N, C, HW).astype(jnp.float32)
    sim = jnp.einsum("nck,ncl->nkl", q, x) / (C ** 0.5)
    attn = jax.nn.softmax(sim, axis=-1)
    ctx = jnp.einsum("nkl,ncl->nck", attn, x)
    return (q + ctx).reshape(N, C, K, 1).astype(obj.dtype)


if __name__ == "__main__":
    # Module has no learnable parameters -> nothing to initialize.
    key = jax.random.PRNGKey(0)
    k1, k2, k3, k4 = jax.random.split(key, 4)

    # Small shapes consistent with the module: N=2, C=32, n_classes=8, 16x16 map.
    N, C, K, H, W = 2, 32, 8, 16, 16
    obj = jax.random.normal(k1, (N, C, K, 1), dtype=jnp.float32)
    pix = jax.random.normal(k2, (N, C, H, W), dtype=jnp.float32)
    ref = _reference(obj, pix)

    # Exact normalization now -> tolerance tightened vs previous revision.
    tol = dict(atol=1e-3, rtol=1e-3)

    # 1) default path: single spatial tile, batch axis has 2 parallel entries.
    out = jax.block_until_ready(augmented_representations(obj, pix))
    assert out.shape == (N, C, K, 1)
    assert jnp.allclose(out, ref, **tol)

    # 2) force multi-tile online softmax over the spatial axis.
    out_t = jax.block_until_ready(
        augmented_representations(obj, pix, spatial_tile=128))
    assert jnp.allclose(out_t, ref, **tol)

    # 3) ragged spatial size -> Pallas partial last block + in-kernel masking
    #    (no wrapper-side jnp.pad / extra HBM pass anymore).
    H2 = W2 = 18                                  # HW = 324, not a multiple of 128
    obj2 = jax.random.normal(k3, (N, C, K, 1), dtype=jnp.float32)
    pix2 = jax.random.normal(k4, (N, C, H2, W2), dtype=jnp.float32)
    out_m = jax.block_until_ready(
        augmented_representations(obj2, pix2, spatial_tile=128))
    assert jnp.allclose(out_m, _reference(obj2, pix2), **tol)

    # 4) bf16 MXU operands with f32 accumulation (recommended on v7x for f32
    #    inputs); compared against the f32 reference with a loose tolerance.
    out_b = jax.block_until_ready(
        augmented_representations(obj, pix, matmul_dtype=jnp.bfloat16))
    assert jnp.allclose(out_b, ref, atol=1e-1, rtol=1e-1)

    print("KERNEL_OK")
</pallas_src>

<mosaic_0001>
module attributes {stable_mosaic.version = 11 : i64} {
  func.func @_augmented_repr_kernel(%arg0: i32, %arg1: i32, %arg2: memref<1x8x32xf32, #tpu.memory_space<vmem>>, %arg3: memref<1x32x256xf32, #tpu.memory_space<vmem>>, %arg4: memref<1x8x32xf32, #tpu.memory_space<vmem>>, %arg5: memref<1x8x1xf32, #tpu.memory_space<vmem>>, %arg6: memref<1x8x1xf32, #tpu.memory_space<vmem>>, %arg7: memref<1x8x32xf32, #tpu.memory_space<vmem>>) attributes {dimension_semantics = [#tpu.dimension_semantics<parallel>, #tpu.dimension_semantics<arbitrary>], iteration_bounds = array<i64: 2, 1>, scalar_prefetch = 0 : i64, scratch_operands = 3 : i64, tpu.core_type = #tpu.core_type<tc>, window_params = [{transform_indices = @transform_0, window_bounds = array<i64: 1, 8, 32>}, {transform_indices = @transform_1, window_bounds = array<i64: 1, 32, 256>}, {transform_indices = @transform_2, window_bounds = array<i64: 1, 8, 32>}]} {
    %c0_i32 = arith.constant 0 : i32
    %0 = arith.cmpi eq, %arg1, %c0_i32 : i32
    %1 = arith.extui %0 : i1 to i32
    %c0_i32_0 = arith.constant 0 : i32
    %2 = arith.cmpi ne, %1, %c0_i32_0 : i32
    scf.if %2 {
      %cst_30 = arith.constant 0xFF800000 : f32
      %33 = vector.broadcast %cst_30 : f32 to vector<1x8x1xf32>
      %c0_31 = arith.constant 0 : index
      %c0_32 = arith.constant 0 : index
      %c0_33 = arith.constant 0 : index
      %34 = vector.load %arg5[%c0_31, %c0_32, %c0_33] : memref<1x8x1xf32, #tpu.memory_space<vmem>>, vector<1x8x1xf32>
      tpu.vector_store %arg5[%c0_31, %c0_32, %c0_33], %33 {strides = array<i32>} : memref<1x8x1xf32, #tpu.memory_space<vmem>>, vector<1x8x1xf32>,
      %cst_34 = arith.constant 0.000000e+00 : f32
      %35 = vector.broadcast %cst_34 : f32 to vector<1x8x1xf32>
      %c0_35 = arith.constant 0 : index
      %c0_36 = arith.constant 0 : index
      %c0_37 = arith.constant 0 : index
      %36 = vector.load %arg6[%c0_35, %c0_36, %c0_37] : memref<1x8x1xf32, #tpu.memory_space<vmem>>, vector<1x8x1xf32>
      tpu.vector_store %arg6[%c0_35, %c0_36, %c0_37], %35 {strides = array<i32>} : memref<1x8x1xf32, #tpu.memory_space<vmem>>, vector<1x8x1xf32>,
      %cst_38 = arith.constant 0.000000e+00 : f32
      %37 = vector.broadcast %cst_38 : f32 to vector<1x8x32xf32>
      %c0_39 = arith.constant 0 : index
      %c0_40 = arith.constant 0 : index
      %c0_41 = arith.constant 0 : index
      %38 = vector.load %arg7[%c0_39, %c0_40, %c0_41] : memref<1x8x32xf32, #tpu.memory_space<vmem>>, vector<1x8x32xf32>
      tpu.vector_store %arg7[%c0_39, %c0_40, %c0_41], %37 {strides = array<i32>} : memref<1x8x32xf32, #tpu.memory_space<vmem>>, vector<1x8x32xf32>,
    } else {
    }
    %c0 = arith.constant 0 : index
    %c0_1 = arith.constant 0 : index
    %c0_2 = arith.constant 0 : index
    %3 = vector.load %arg2[%c0, %c0_1, %c0_2] : memref<1x8x32xf32, #tpu.memory_space<vmem>>, vector<1x8x32xf32>
    %cst = arith.constant 0.176776692 : f32
    %4 = vector.broadcast %cst : f32 to vector<1x8x32xf32>
    %5 = arith.mulf %3, %4 : vector<1x8x32xf32>
    %c0_3 = arith.constant 0 : index
    %c0_4 = arith.constant 0 : index
    %c0_5 = arith.constant 0 : index
    %6 = vector.load %arg5[%c0_3, %c0_4, %c0_5] : memref<1x8x1xf32, #tpu.memory_space<vmem>>, vector<1x8x1xf32>
    %c0_6 = arith.constant 0 : index
    %c0_7 = arith.constant 0 : index
    %c0_8 = arith.constant 0 : index
    %7 = vector.load %arg6[%c0_6, %c0_7, %c0_8] : memref<1x8x1xf32, #tpu.memory_space<vmem>>, vector<1x8x1xf32>
    %c0_9 = arith.constant 0 : index
    %c0_10 = arith.constant 0 : index
    %c0_11 = arith.constant 0 : index
    %8 = vector.load %arg7[%c0_9, %c0_10, %c0_11] : memref<1x8x32xf32, #tpu.memory_space<vmem>>, vector<1x8x32xf32>
    %c0_12 = arith.constant 0 : index
    %c0_13 = arith.constant 0 : index
    %c0_14 = arith.constant 0 : index
    %9 = vector.load %arg3[%c0_12, %c0_13, %c0_14] : memref<1x32x256xf32, #tpu.memory_space<vmem>>, vector<1x32x256xf32>
    "tpu.trace_start"() <{level = 10 : i32, message = "bkc,bcl->bkl"}> : () -> ()
    %cst_15 = arith.constant dense<0.000000e+00> : vector<1x8x256xf32>
    %10 = tpu.matmul %5, %9, %cst_15 {dimension_numbers = #tpu.dot_dimension_numbers<[2], [1], [1], [2], [0, 0, 0, 1, 1, 2], [0], [0]>} : vector<1x8x32xf32>, vector<1x32x256xf32>, vector<1x8x256xf32> -> vector<1x8x256xf32>
    "tpu.trace_stop"() : () -> ()
    %cst_16 = arith.constant dense<0xFF800000> : vector<1x8xf32>
    %11 = vector.multi_reduction <maximumf>, %10, %cst_16 [2] : vector<1x8x256xf32> to vector<1x8xf32>
    %12 = vector.shape_cast %11 : vector<1x8xf32> to vector<1x8x1xf32>
    %13 = arith.maximumf %6, %12 : vector<1x8x1xf32>
    %14 = arith.subf %6, %13 : vector<1x8x1xf32>
    %15 = math.exp %14 : vector<1x8x1xf32>
    %16 = vector.broadcast %13 : vector<1x8x1xf32> to vector<1x8x256xf32>
    %17 = arith.subf %10, %16 : vector<1x8x256xf32>
    %18 = math.exp %17 : vector<1x8x256xf32>
    %19 = arith.mulf %15, %7 : vector<1x8x1xf32>
    %cst_17 = arith.constant dense<0.000000e+00> : vector<1x8xf32>
    %20 = vector.multi_reduction <add>, %18, %cst_17 [2] : vector<1x8x256xf32> to vector<1x8xf32>
    %21 = vector.shape_cast %20 : vector<1x8xf32> to vector<1x8x1xf32>
    %22 = arith.addf %19, %21 : vector<1x8x1xf32>
    "tpu.trace_start"() <{level = 10 : i32, message = "bkl,bcl->bkc"}> : () -> ()
    %cst_18 = arith.constant dense<0.000000e+00> : vector<1x8x32xf32>
    %23 = tpu.matmul %18, %9, %cst_18 {dimension_numbers = #tpu.dot_dimension_numbers<[2], [2], [1], [1], [0, 0, 0, 1, 1, 1], [0], [0]>} : vector<1x8x256xf32>, vector<1x32x256xf32>, vector<1x8x32xf32> -> vector<1x8x32xf32>
    "tpu.trace_stop"() : () -> ()
    %24 = vector.broadcast %15 : vector<1x8x1xf32> to vector<1x8x32xf32>
    %25 = arith.mulf %24, %8 : vector<1x8x32xf32>
    %26 = arith.addf %25, %23 : vector<1x8x32xf32>
    %c0_19 = arith.constant 0 : index
    %c0_20 = arith.constant 0 : index
    %c0_21 = arith.constant 0 : index
    %27 = vector.load %arg5[%c0_19, %c0_20, %c0_21] : memref<1x8x1xf32, #tpu.memory_space<vmem>>, vector<1x8x1xf32>
    tpu.vector_store %arg5[%c0_19, %c0_20, %c0_21], %13 {strides = array<i32>} : memref<1x8x1xf32, #tpu.memory_space<vmem>>, vector<1x8x1xf32>,
    %c0_22 = arith.constant 0 : index
    %c0_23 = arith.constant 0 : index
    %c0_24 = arith.constant 0 : index
    %28 = vector.load %arg6[%c0_22, %c0_23, %c0_24] : memref<1x8x1xf32, #tpu.memory_space<vmem>>, vector<1x8x1xf32>
    tpu.vector_store %arg6[%c0_22, %c0_23, %c0_24], %22 {strides = array<i32>} : memref<1x8x1xf32, #tpu.memory_space<vmem>>, vector<1x8x1xf32>,
    %c0_25 = arith.constant 0 : index
    %c0_26 = arith.constant 0 : index
    %c0_27 = arith.constant 0 : index
    %29 = vector.load %arg7[%c0_25, %c0_26, %c0_27] : memref<1x8x32xf32, #tpu.memory_space<vmem>>, vector<1x8x32xf32>
    tpu.vector_store %arg7[%c0_25, %c0_26, %c0_27], %26 {strides = array<i32>} : memref<1x8x32xf32, #tpu.memory_space<vmem>>, vector<1x8x32xf32>,
    %c0_i32_28 = arith.constant 0 : i32
    %30 = arith.cmpi eq, %arg1, %c0_i32_28 : i32
    %31 = arith.extui %30 : i1 to i32
    %c0_i32_29 = arith.constant 0 : i32
    %32 = arith.cmpi ne, %31, %c0_i32_29 : i32
    scf.if %32 {
      %c0_30 = arith.constant 0 : index
      %c0_31 = arith.constant 0 : index
      %c0_32 = arith.constant 0 : index
      %33 = vector.load %arg7[%c0_30, %c0_31, %c0_32] : memref<1x8x32xf32, #tpu.memory_space<vmem>>, vector<1x8x32xf32>
      %c0_33 = arith.constant 0 : index
      %c0_34 = arith.constant 0 : index
      %c0_35 = arith.constant 0 : index
      %34 = vector.load %arg6[%c0_33, %c0_34, %c0_35] : memref<1x8x1xf32, #tpu.memory_space<vmem>>, vector<1x8x1xf32>
      %35 = vector.broadcast %34 : vector<1x8x1xf32> to vector<1x8x32xf32>
      %36 = arith.divf %33, %35 : vector<1x8x32xf32>
      %37 = arith.addf %3, %36 : vector<1x8x32xf32>
      %c0_36 = arith.constant 0 : index
      %c0_37 = arith.constant 0 : index
      %c0_38 = arith.constant 0 : index
      %38 = vector.load %arg4[%c0_36, %c0_37, %c0_38] : memref<1x8x32xf32, #tpu.memory_space<vmem>>, vector<1x8x32xf32>
      tpu.vector_store %arg4[%c0_36, %c0_37, %c0_38], %37 {strides = array<i32>} : memref<1x8x32xf32, #tpu.memory_space<vmem>>, vector<1x8x32xf32>,
    } else {
    }
    return
  }
  func.func @transform_0(%arg0: i32, %arg1: i32) -> (i32, i32, i32) {
    %c0_i32 = arith.constant 0 : i32
    %c0_i32_0 = arith.constant 0 : i32
    %c0_i32_1 = arith.constant 0 : i32
    return %arg0, %c0_i32, %c0_i32_0 : i32, i32, i32
  }
  func.func @transform_1(%arg0: i32, %arg1: i32) -> (i32, i32, i32) {
    %c0_i32 = arith.constant 0 : i32
    %c0_i32_0 = arith.constant 0 : i32
    return %arg0, %c0_i32, %arg1 : i32, i32, i32
  }
  func.func @transform_2(%arg0: i32, %arg1: i32) -> (i32, i32, i32) {
    %c0_i32 = arith.constant 0 : i32
    %c0_i32_0 = arith.constant 0 : i32
    %c0_i32_1 = arith.constant 0 : i32
    return %arg0, %c0_i32, %c0_i32_0 : i32, i32, i32
  }
}

</mosaic_0001>

<llo_original>
// kernel: tpu_custom_call.1
$region0: #{tpu_custom_call.1}
  #allocation0 [shape = 'u32[]', space=smem, size = 0x4, offset = 0x4, fixed_abs, tag = 'smem constant byte address 0x4 - core index']
  #allocation1 [shape = 'u32[144,128]{1,0:T(1,128)}', space=vmem, size = 0x12000, scoped, tag = 'internal scratch']
  #allocation2 [shape = 'f32[1,8,1]{2,1,0:T(8,128)}', space=vmem, size = 0x1000, scoped, tag = 'scratch operand']
  #allocation3 [shape = 'f32[1,8,1]{2,1,0:T(8,128)}', space=vmem, size = 0x1000, scoped, tag = 'scratch operand']
  #allocation4 [shape = 'f32[1,8,32]{2,1,0:T(8,128)}', space=vmem, size = 0x1000, scoped, tag = 'scratch operand']
  %s0 = inlined_call_operand.hbm [shape: f32[2,8,32], index: 0, kind: input, shape index: {}]
  %s1 = inlined_call_operand.hbm [shape: f32[2,32,256], index: 1, kind: input, shape index: {}]
  %s2 = inlined_call_operand.hbm [shape: f32[2,8,32], index: 2, kind: output, shape index: {}]
  %s3 = sld [smem:[#allocation0]]
  $region57: #{tpu_custom_call.1} parent=0
    _
  %s5 = ssub.s32 1, %s3
  %s6 = scalar_select 0, %s5, %s3
  $region1: #{tpu_custom_call.1} parent=0
    #allocation5 [shape = 'u8[8192]{0}', space=vmem, size = 0x2000, scoped, tag = 'input window, operand 0']
    #allocation6 [shape = 's32[2]{0}', space=sflag, size = 0x8, scoped, tag = 'scoped memory for tpu_custom_call.1']
    #allocation7 [shape = 's32[2]{0}', space=sflag, size = 0x8, scoped, tag = 'scoped memory for tpu_custom_call.1']
    #allocation8 [shape = 'u8[65536]{0}', space=vmem, size = 0x10000, scoped, tag = 'input window, operand 1']
    #allocation9 [shape = 's32[2]{0}', space=sflag, size = 0x8, scoped, tag = 'scoped memory for tpu_custom_call.1']
    #allocation10 [shape = 'u8[8192]{0}', space=vmem, size = 0x2000, scoped, tag = 'output window, operand 0']
    %7 = vsyncpa [#allocation6], 0
    %s8 = scalar_lea.sflag [#allocation6], 1
    %9 = vsyncpa %s8, 0
    %10 = vsyncpa [#allocation9], 0
    %s11 = scalar_lea.sflag [#allocation9], 1
    %12 = vsyncpa %s11, 0
    %13 = vsyncpa [#allocation7], 0
    %s14 = scalar_lea.sflag [#allocation7], 1
    %15 = vsyncpa %s14, 0
    loop: start=0, step=1, limit=4
    $region2: #{tpu_custom_call.1} parent=1 // loop_pre_header
      _
    $region3: #{tpu_custom_call.1} parent=1 // loop_header
      %s17 = sphi 0, %s21
      %p18 = scmp.ge.s32.totalorder %s17, 4
      %s24 = sphi 0, %s36
      %s25 = sphi 0, %s32
      %s26 = sphi 0, %s24
      %s27 = sphi 0, %s25
      %s28 = sphi 0, %s26
      %s29 = sphi 0, %s27
      %s39 = sphi 0, %s41
      %s42 = sphi 0, %s39
      %s43 = sphi 0, %s42
      %s59 = sphi 0, %s43
      %s67 = sphi 0, %s69
      %s70 = sphi 0, %s67
      %s71 = sphi 0, %s70
      %s87 = sphi 0, %s71
      %s93 = sphi 0, %s95
      %s96 = sphi 0, %s93
      %s97 = sphi 0, %s96
      %s113 = sphi 0, %s97
    $region4: #{tpu_custom_call.1} parent=1 // loop_header_branch
      %20 = sbr.rel (%p18) target = $region8
    $region5: #{tpu_custom_call.1} parent=1 // loop_body
      %s22 = ssub.s32 %s17, 1
      %s23 = ssub.s32 %s17, 2
      %s30 = sadd.s32 1, %s25
      %p31 = scmp.ge.s32.totalorder %s30, 1
      %s32 = scalar_select %p31, 0, %s30
      %s33 = sadd.s32 1, %s24
      %s34 = scalar_select %p31, %s33, %s24
      %p35 = scmp.ge.s32.totalorder %s34, 2
      %s36 = scalar_select %p35, 0, %s34
      %s37 = ssub.s32 %s24, %s36
      %p38 = scmp.eq.s32.totalorder %s37, 0
      %s40 = sadd.s32 %s39, 1
      %s41 = scalar_select %p38, %s39, %s40
      %p44 = pneg %p38
      %p45 = scmp.eq.s32.totalorder %s17, 1
      %p46 = por %p44, %p45
      %p47 = scmp.ne.s32.totalorder %s39, %s42
      %p48 = scmp.eq.s32.totalorder %s17, 0
      %p49 = por %p47, %p48
      %p50 = scmp.ne.s32.totalorder %s39, %s42
      %p51 = scmp.eq.s32.totalorder %s22, 1
      %p52 = por %p50, %p51
      %p53 = scmp.ne.s32.totalorder %s42, %s43
      %p54 = scmp.eq.s32.totalorder %s22, 0
      %p55 = por %p53, %p54
      %p56 = scmp.ne.s32.totalorder %s42, %s43
      %p57 = scmp.eq.s32.totalorder %s23, 1
      %p58 = por %p56, %p57
      %p60 = scmp.ne.s32.totalorder %s43, %s59
      %p61 = scmp.eq.s32.totalorder %s23, 0
      %p62 = por %p60, %p61
      %s63 = ssub.s32 %s24, %s36
      %s64 = ssub.s32 %s25, %s32
      %s65 = sor.u32 %s63, %s64
      %p66 = scmp.eq.s32.totalorder %s65, 0
      %s68 = sadd.s32 %s67, 1
      %s69 = scalar_select %p66, %s67, %s68
      %p72 = pneg %p66
      %p73 = scmp.eq.s32.totalorder %s17, 1
      %p74 = por %p72, %p73
      %p75 = scmp.ne.s32.totalorder %s67, %s70
      %p76 = scmp.eq.s32.totalorder %s17, 0
      %p77 = por %p75, %p76
      %p78 = scmp.ne.s32.totalorder %s67, %s70
      %p79 = scmp.eq.s32.totalorder %s22, 1
      %p80 = por %p78, %p79
      %p81 = scmp.ne.s32.totalorder %s70, %s71
      %p82 = scmp.eq.s32.totalorder %s22, 0
      %p83 = por %p81, %p82
      %p84 = scmp.ne.s32.totalorder %s70, %s71
      %p85 = scmp.eq.s32.totalorder %s23, 1
      %p86 = por %p84, %p85
      %p88 = scmp.ne.s32.totalorder %s71, %s87
      %p89 = scmp.eq.s32.totalorder %s23, 0
      %p90 = por %p88, %p89
      %s91 = ssub.s32 %s24, %s36
      %p92 = scmp.eq.s32.totalorder %s91, 0
      %s94 = sadd.s32 %s93, 1
      %s95 = scalar_select %p92, %s93, %s94
      %p98 = pneg %p92
      %p99 = scmp.eq.s32.totalorder %s17, 1
      %p100 = por %p98, %p99
      %p101 = scmp.ne.s32.totalorder %s93, %s96
      %p102 = scmp.eq.s32.totalorder %s17, 0
      %p103 = por %p101, %p102
      %p104 = scmp.ne.s32.totalorder %s93, %s96
      %p105 = scmp.eq.s32.totalorder %s22, 1
      %p106 = por %p104, %p105
      %p107 = scmp.ne.s32.totalorder %s96, %s97
      %p108 = scmp.eq.s32.totalorder %s22, 0
      %p109 = por %p107, %p108
      %p110 = scmp.ne.s32.totalorder %s96, %s97
      %p111 = scmp.eq.s32.totalorder %s23, 1
      %p112 = por %p110, %p111
      %p114 = scmp.ne.s32.totalorder %s97, %s113
      %p115 = scmp.eq.s32.totalorder %s23, 0
      %p116 = por %p114, %p115
      %p117 = scmp.le.s32.totalorder 1, %s17
      %p118 = scmp.lt.s32.totalorder %s17, 3
      %p119 = pnand %p117, %p118
      %p120 = pneg %p119
      // Predicated region
      $region9: #{tpu_custom_call.1} parent=5 // pred_check
        _
      $region10: #{tpu_custom_call.1} parent=5 // pred_check_branch
        %122 = sbr.rel (%p119) target = $region12
      $region11: #{tpu_custom_call.1} parent=5 // pred_region
        %s123 = ssub.s32 %s17, 1
      $region12: #{tpu_custom_call.1} parent=5 // pred_fallthru
        _
      %p124 = scmp.lt.s32.totalorder %s17, 2
      // Predicated region
      $region13: #{tpu_custom_call.1} parent=5 // pred_check
        %p125 = pneg %p124
      $region14: #{tpu_custom_call.1} parent=5 // pred_check_branch
        %127 = sbr.rel (%p125) target = $region16
      $region15: #{tpu_custom_call.1} parent=5 // pred_region
        // Predicated region
        $region17: #{tpu_custom_call.1} parent=15 // pred_check
          %p128 = pneg %p49
        $region18: #{tpu_custom_call.1} parent=15 // pred_check_branch
          %130 = sbr.rel (%p128) target = $region20
        $region19: #{tpu_custom_call.1} parent=15 // pred_region
          %s131 = sand.u32 %s39, 1
          %s132 = scalar_lea.sflag [#allocation6], %s131
          %s133 = sand.u32 %s39, 1
          %s134 = smul.addr %s133, 8
          %s135 = scalar_lea.vmem [#allocation5], %s134
          %s137 = ssub.s32 128, 128
          %138 = vsyncadd %s132, %s137
          %s139 = smul.addr %s24, 128
          %s140 = scalar_lea.hbm %s0, %s139
          %s142 = sshll.u32 %s135, 4
          %s143 = int_to_ptr.vmem [resolvable:$true] %s142
          %145 = dma.hbm_to_vmem [thread:$0]  %s140, 128, %s143, %s132
        $region20: #{tpu_custom_call.1} parent=15 // pred_fallthru
          _
        // Predicated region
        $region21: #{tpu_custom_call.1} parent=15 // pred_check
          %p146 = pneg %p77
        $region22: #{tpu_custom_call.1} parent=15 // pred_check_branch
          %148 = sbr.rel (%p146) target = $region24
        $region23: #{tpu_custom_call.1} parent=15 // pred_region
          %s149 = sand.u32 %s67, 1
          %s150 = scalar_lea.sflag [#allocation9], %s149
          %s151 = sand.u32 %s67, 1
          %s152 = smul.addr %s151, 64
          %s153 = scalar_lea.vmem [#allocation8], %s152
          %s154 = smul.u32 2, %s25
          %s156 = ssub.s32 1024, 1024
          %157 = vsyncadd %s150, %s156
          %s158 = smul.addr %s24, 8
          %s159 = sadd.s32 %s154, %s158
          %s160 = smul.addr %s159, 128
          %s161 = scalar_lea.hbm %s1, %s160
          %s162 = sshll.u32 %s153, 4
          %s163 = int_to_ptr.vmem [resolvable:$true] %s162
          %168 = dma.hbm_to_vmem [thread:$0]  %s161, 1024, %s163, %s150, 256, 256, 16
        $region24: #{tpu_custom_call.1} parent=15 // pred_fallthru
          _
      $region16: #{tpu_custom_call.1} parent=5 // pred_fallthru
        _
      %p169 = scmp.le.s32.totalorder 1, %s17
      %p170 = scmp.lt.s32.totalorder %s17, 3
      %p171 = pnand %p169, %p170
      %p172 = pneg %p171
      // Predicated region
      $region25: #{tpu_custom_call.1} parent=5 // pred_check
        _
      $region26: #{tpu_custom_call.1} parent=5 // pred_check_branch
        %174 = sbr.rel (%p171) target = $region28
      $region27: #{tpu_custom_call.1} parent=5 // pred_region
        %s175 = ssub.s32 %s17, 1
        %s176 = sand.u32 %s42, 1
        %s177 = scalar_lea.sflag [#allocation6], %s176
        %s178 = sand.u32 %s42, 1
        %s179 = smul.addr %s178, 8
        %s180 = scalar_lea.vmem [#allocation5], %s179
        // Predicated region
        $region29: #{tpu_custom_call.1} parent=27 // pred_check
          %p181 = pneg %p55
        $region30: #{tpu_custom_call.1} parent=27 // pred_check_branch
          %183 = sbr.rel (%p181) target = $region32
        $region31: #{tpu_custom_call.1} parent=27 // pred_region
          %184 = dma.done %s177, 128
        $region32: #{tpu_custom_call.1} parent=27 // pred_fallthru
          _
        %s185 = sand.u32 %s70, 1
        %s186 = scalar_lea.sflag [#allocation9], %s185
        %s187 = sand.u32 %s70, 1
        %s188 = smul.addr %s187, 64
        %s189 = scalar_lea.vmem [#allocation8], %s188
        // Predicated region
        $region33: #{tpu_custom_call.1} parent=27 // pred_check
          %p190 = pneg %p83
        $region34: #{tpu_custom_call.1} parent=27 // pred_check_branch
          %192 = sbr.rel (%p190) target = $region36
        $region35: #{tpu_custom_call.1} parent=27 // pred_region
          %193 = dma.done %s186, 1024
        $region36: #{tpu_custom_call.1} parent=27 // pred_fallthru
          _
        %s194 = sand.u32 %s42, 1
        %s195 = scalar_lea.sflag [#allocation6], %s194
        %s196 = sand.u32 %s42, 1
        %s197 = smul.addr %s196, 8
        %s198 = scalar_lea.vmem [#allocation5], %s197
        %p199 = pneg %p55
        %p200 = pneg %p52
        %s201 = sand.u32 %s70, 1
        %s202 = scalar_lea.sflag [#allocation9], %s201
        %s203 = sand.u32 %s70, 1
        %s204 = smul.addr %s203, 64
        %s205 = scalar_lea.vmem [#allocation8], %s204
        %p206 = pneg %p83
        %p207 = pneg %p80
        %p208 = pneg %p109
        %p209 = pneg %p106
        %s210 = sand.u32 %s96, 1
        %s211 = scalar_lea.sflag [#allocation7], %s210
        %s212 = sand.u32 %s96, 1
        %s213 = smul.addr %s212, 8
        %s214 = scalar_lea.vmem [#allocation10], %s213
        %s215 = smul.u32 2, %s27
        %p216 = scmp.eq.s32.totalorder %s27, 0
        // Predicated region
        $region37: #{tpu_custom_call.1} parent=27 // pred_check
          %p217 = pneg %p216
        $region38: #{tpu_custom_call.1} parent=27 // pred_check_branch
          %219 = sbr.rel (%p217) target = $region40
        $region39: #{tpu_custom_call.1} parent=27 // pred_region
          %vm220 = vcmask 7168
          %221 = vst.msk [vmem:[#allocation2] sm:$0xff] %vm220, -inf
          %222 = vst.msk [vmem:[#allocation3] sm:$0xff] %vm220, 0.0
          %vm223 = vcmask 261120
          %224 = vst.msk [vmem:[#allocation4] sm:$0xff] %vm223, 0.0
        $region40: #{tpu_custom_call.1} parent=27 // pred_fallthru
          _
        %v225 = vld [vmem:[%s180] sm:$0xff]
        %v226 = vmul.f32 %v225, 0.17677669
        %v227 = vld [vmem:[#allocation2] sm:$0xff]
        %v228 = vld [vmem:[#allocation3] sm:$0xff]
        %v229 = vld [vmem:[#allocation4] sm:$0xff]
        %v230 = vld [vmem:[%s189] sm:$0xff]
        %v231 = vld [vmem:[%s189 + $0x8] sm:$0xff]
        %v232 = vld [vmem:[%s189 + $0x10] sm:$0xff]
        %v233 = vld [vmem:[%s189 + $0x18] sm:$0xff]
        %v234 = vld [vmem:[%s189 + $0x20] sm:$0xff]
        %v235 = vld [vmem:[%s189 + $0x28] sm:$0xff]
        %v236 = vld [vmem:[%s189 + $0x30] sm:$0xff]
        %v237 = vld [vmem:[%s189 + $0x38] sm:$0xff]
        %vm238 = vcmask 261120
        %v240 = vsel %vm238, %v226, 0
        %242 = vmatprep.subr.mxu0 0.0
        %243 = vmatpush1.msra.mxu0 0.0
        %244 = vmatprep.subr.mxu0 0.0
        %245 = vmatpush1.msra.mxu0 0.0
        %246 = vmatprep.subr.mxu0 0.0
        %247 = vmatpush1.msra.mxu0 0.0
        %248 = vmatprep.subr.mxu0 0.0
        %249 = vmatpush1.msra.mxu0 0.0
        %250 = vmatprep.subr.mxu0 0.0
        %251 = vmatpush1.msra.mxu0 0.0
        %252 = vmatprep.subr.mxu0 0.0
        %253 = vmatpush1.msra.mxu0 0.0
        %254 = vmatprep.subr.mxu0 0.0
        %255 = vmatpush1.msra.mxu0 0.0
        %256 = vmatprep.subr.mxu0 0.0
        %257 = vmatpush1.msra.mxu0 0.0
        %258 = vmatprep.subr.mxu0 0.0
        %259 = vmatpush1.msra.mxu0 0.0
        %260 = vmatprep.subr.mxu0 0.0
        %261 = vmatpush1.msra.mxu0 0.0
        %262 = vmatprep.subr.mxu0 0.0
        %263 = vmatpush1.msra.mxu0 0.0
        %264 = vmatprep.subr.mxu0 0.0
        %265 = vmatpush1.msra.mxu0 0.0
        %266 = vmatprep.subr.mxu0 %v237
        %267 = vmatpush1.msra.mxu0 %v236
        %268 = vmatprep.subr.mxu0 %v235
        %269 = vmatpush1.msra.mxu0 %v234
        %270 = vmatprep.subr.mxu0 %v233
        %271 = vmatpush1.msra.mxu0 %v232
        %272 = vmatprep.subr.mxu0 %v231
        %273 = vmatpush1.msra.mxu0 %v230
        %274 = vmatprep.subr.mxu0 0.0
        %275 = vmatpush2.msra.mxu0 0.0
        %276 = vmatprep.subr.mxu0 0.0
        %277 = vmatpush2.msra.mxu0 0.0
        %278 = vmatprep.subr.mxu0 0.0
        %279 = vmatpush2.msra.mxu0 0.0
        %280 = vmatprep.subr.mxu0 0.0
        %281 = vmatpush2.msra.mxu0 0.0
        %282 = vmatprep.subr.mxu0 0.0
        %283 = vmatpush2.msra.mxu0 0.0
        %284 = vmatprep.subr.mxu0 0.0
        %285 = vmatpush2.msra.mxu0 0.0
        %286 = vmatprep.subr.mxu0 0.0
        %287 = vmatpush2.msra.mxu0 0.0
        %288 = vmatprep.subr.mxu0 0.0
        %289 = vmatpush2.msra.mxu0 0.0
        %290 = vmatprep.subr.mxu0 0.0
        %291 = vmatpush2.msra.mxu0 0.0
        %292 = vmatprep.subr.mxu0 0.0
        %293 = vmatpush2.msra.mxu0 0.0
        %294 = vmatprep.subr.mxu0 0.0
        %295 = vmatpush2.msra.mxu0 0.0
        %296 = vmatprep.subr.mxu0 0.0
        %297 = vmatpush2.msra.mxu0 0.0
        %298 = vmatprep.subr.mxu0 0.0
        %299 = vmatpush2.msra.mxu0 0.0
        %300 = vmatprep.subr.mxu0 0.0
        %301 = vmatpush2.msra.mxu0 0.0
        %302 = vmatprep.subr.mxu0 0.0
        %303 = vmatpush2.msra.mxu0 0.0
        %304 = vmatprep.subr.mxu0 0.0
        %305 = vmatpush2.msra.mxu0 0.0
        %306 = vmatprep.mubr.f32.mxu0 0.0
        %307 = vmatmul.mubr.f32.gmra.mxu0 %v240
        %v308 = vpop.f32.mrf.mxu0
        %v309 = vadd.f32 0.0, %v308
        %v310 = vpop.f32.mrf.mxu0
        %v311 = vadd.f32 0.0, %v310
        %312 = vdwg.mxu0
        %v313 = vmax.f32 %v309, %v311
        %314 = vmax.xlane.f32.xlu0 %v313
        %v315 = vpop.xlane.xlu0 %314
        %v316 = vmax.f32 %v227, %v315
        %v317 = vsub.f32 %v227, %v316
        %v318 = vmul.f32 %v317, 1.442695
        %v319 = vpow.pop %v318
        %321 = vset.pattern.permute.xlu0 0
        %322 = vperm.xlu0 %321, %v316
        %v323 = vpop.permute.xlu0 %322
        %v325 = vsub.f32 %v309, %v323
        %v326 = vsub.f32 %v311, %v323
        %v327 = vmul.f32 %v325, 1.442695
        %v328 = vpow.pop %v327
        %v329 = vmul.f32 %v326, 1.442695
        %v330 = vpow.pop %v329
        %v331 = vmul.f32 %v319, %v228
        %v332 = vadd.f32 %v328, %v330
        %333 = vadd.xlane.f32.xlu0 %v332
        %v334 = vpop.xlane.xlu0 %333
        %v335 = vadd.f32 %v331, %v334
        %336 = vmatprep.subr.mxu0 0.0
        %337 = vmatpush1.xpose.msra.mxu0 0.0
        %338 = vmatprep.subr.mxu0 0.0
        %339 = vmatpush1.xpose.msra.mxu0 0.0
        %340 = vmatprep.subr.mxu0 0.0
        %341 = vmatpush1.xpose.msra.mxu0 0.0
        %342 = vmatprep.subr.mxu0 0.0
        %343 = vmatpush1.xpose.msra.mxu0 0.0
        %344 = vmatprep.subr.mxu0 0.0
        %345 = vmatpush1.xpose.msra.mxu0 0.0
        %346 = vmatprep.subr.mxu0 0.0
        %347 = vmatpush1.xpose.msra.mxu0 0.0
        %348 = vmatprep.subr.mxu0 0.0
        %349 = vmatpush1.xpose.msra.mxu0 0.0
        %350 = vmatprep.subr.mxu0 0.0
        %351 = vmatpush1.xpose.msra.mxu0 0.0
        %352 = vmatprep.subr.mxu0 0.0
        %353 = vmatpush1.xpose.msra.mxu0 0.0
        %354 = vmatprep.subr.mxu0 0.0
        %355 = vmatpush1.xpose.msra.mxu0 0.0
        %356 = vmatprep.subr.mxu0 0.0
        %357 = vmatpush1.xpose.msra.mxu0 0.0
        %358 = vmatprep.subr.mxu0 0.0
        %359 = vmatpush1.xpose.msra.mxu0 0.0
        %360 = vmatprep.subr.mxu0 %v237
        %361 = vmatpush1.xpose.msra.mxu0 %v236
        %362 = vmatprep.subr.mxu0 %v235
        %363 = vmatpush1.xpose.msra.mxu0 %v234
        %364 = vmatprep.subr.mxu0 %v233
        %365 = vmatpush1.xpose.msra.mxu0 %v232
        %366 = vmatprep.subr.mxu0 %v231
        %367 = vmatpush1.xpose.msra.mxu0 %v230
        %368 = vmatprep.subr.mxu0 0.0
        %369 = vmatpush2.xpose.msra.mxu0 0.0
        %370 = vmatprep.subr.mxu0 0.0
        %371 = vmatpush2.xpose.msra.mxu0 0.0
        %372 = vmatprep.subr.mxu0 0.0
        %373 = vmatpush2.xpose.msra.mxu0 0.0
        %374 = vmatprep.subr.mxu0 0.0
        %375 = vmatpush2.xpose.msra.mxu0 0.0
        %376 = vmatprep.subr.mxu0 0.0
        %377 = vmatpush2.xpose.msra.mxu0 0.0
        %378 = vmatprep.subr.mxu0 0.0
        %379 = vmatpush2.xpose.msra.mxu0 0.0
        %380 = vmatprep.subr.mxu0 0.0
        %381 = vmatpush2.xpose.msra.mxu0 0.0
        %382 = vmatprep.subr.mxu0 0.0
        %383 = vmatpush2.xpose.msra.mxu0 0.0
        %384 = vmatprep.subr.mxu0 0.0
        %385 = vmatpush2.xpose.msra.mxu0 0.0
        %386 = vmatprep.subr.mxu0 0.0
        %387 = vmatpush2.xpose.msra.mxu0 0.0
        %388 = vmatprep.subr.mxu0 0.0
        %389 = vmatpush2.xpose.msra.mxu0 0.0
        %390 = vmatprep.subr.mxu0 0.0
        %391 = vmatpush2.xpose.msra.mxu0 0.0
        %392 = vmatprep.subr.mxu0 0.0
        %393 = vmatpush2.xpose.msra.mxu0 0.0
        %394 = vmatprep.subr.mxu0 0.0
        %395 = vmatpush2.xpose.msra.mxu0 0.0
        %396 = vmatprep.subr.mxu0 0.0
        %397 = vmatpush2.xpose.msra.mxu0 0.0
        %398 = vmatprep.subr.mxu0 0.0
        %399 = vmatpush2.xpose.msra.mxu0 0.0
        %400 = vmatprep.mubr.f32.mxu0 %v330
        %401 = vmatmul.mubr.f32.gmra.mxu0 %v328
        %v402 = vpop.f32.mrf.mxu0
        %v403 = vadd.f32 0.0, %v402
        %v404 = vpop.f32.mrf.mxu0
        %405 = vdwg.mxu0
        %407 = vset.pattern.permute.xlu0 0
        %408 = vperm.xlu0 %407, %v319
        %v409 = vpop.permute.xlu0 %408
        %v411 = vmul.f32 %v409, %v229
        %v412 = vadd.f32 %v411, %v403
        %vm413 = vcmask 7168
        %414 = vst.msk [vmem:[#allocation2] sm:$0xff] %vm413, %v316
        %415 = vst.msk [vmem:[#allocation3] sm:$0xff] %vm413, %v335
        %416 = vst.msk [vmem:[#allocation4] sm:$0xff] %vm238, %v412
        // Predicated region
        $region41: #{tpu_custom_call.1} parent=27 // pred_check
          %p417 = pneg %p216
        $region42: #{tpu_custom_call.1} parent=27 // pred_check_branch
          %419 = sbr.rel (%p417) target = $region44
        $region43: #{tpu_custom_call.1} parent=27 // pred_region
          %v420 = vld [vmem:[#allocation4] sm:$0xff]
          %v421 = vld [vmem:[#allocation3] sm:$0xff]
          %423 = vset.pattern.permute.xlu0 0
          %424 = vperm.xlu0 %423, %v421
          %v425 = vpop.permute.xlu0 %424
          %v427 = vrcp.pop %v425
          %v428 = vmul.f32 %v420, %v427
          %v429 = vadd.f32 %v225, %v428
          %430 = vst.msk [vmem:[%s214] sm:$0xff] %vm238, %v429
        $region44: #{tpu_custom_call.1} parent=27 // pred_fallthru
          _
        %s431 = sand.u32 %s96, 1
        %s432 = scalar_lea.sflag [#allocation7], %s431
        %s433 = sand.u32 %s96, 1
        %s434 = smul.addr %s433, 8
        %s435 = scalar_lea.vmem [#allocation10], %s434
        // Predicated region
        $region45: #{tpu_custom_call.1} parent=27 // pred_check
          %p436 = pneg %p106
        $region46: #{tpu_custom_call.1} parent=27 // pred_check_branch
          %438 = sbr.rel (%p436) target = $region48
        $region47: #{tpu_custom_call.1} parent=27 // pred_region
          %s440 = ssub.s32 128, 128
          %441 = vsyncadd %s432, %s440
          %s442 = smul.addr %s26, 128
          %s443 = scalar_lea.hbm %s2, %s442
          %s445 = sshll.u32 %s435, 4
          %s446 = int_to_ptr.vmem [resolvable:$true] %s445
          %448 = dma.vmem_to_hbm [thread:$0]  %s446, 128, %s443, %s432
        $region48: #{tpu_custom_call.1} parent=27 // pred_fallthru
          _
      $region28: #{tpu_custom_call.1} parent=5 // pred_fallthru
        _
      %p449 = scmp.le.s32.totalorder 2, %s17
      // Predicated region
      $region49: #{tpu_custom_call.1} parent=5 // pred_check
        %p450 = pneg %p449
      $region50: #{tpu_custom_call.1} parent=5 // pred_check_branch
        %452 = sbr.rel (%p450) target = $region52
      $region51: #{tpu_custom_call.1} parent=5 // pred_region
        %s453 = ssub.s32 %s17, 2
        // Predicated region
        $region53: #{tpu_custom_call.1} parent=51 // pred_check
          %p454 = pneg %p112
        $region54: #{tpu_custom_call.1} parent=51 // pred_check_branch
          %456 = sbr.rel (%p454) target = $region56
        $region55: #{tpu_custom_call.1} parent=51 // pred_region
          %s457 = sand.u32 %s97, 1
          %s458 = scalar_lea.sflag [#allocation7], %s457
          %s459 = sand.u32 %s97, 1
          %s460 = smul.addr %s459, 8
          %s461 = scalar_lea.vmem [#allocation10], %s460
          %462 = dma.done %s458, 128
        $region56: #{tpu_custom_call.1} parent=51 // pred_fallthru
          _
      $region52: #{tpu_custom_call.1} parent=5 // pred_fallthru
        _
    $region6: #{tpu_custom_call.1} parent=1 // loop_footer
      %s21 = sadd.s32 1, %s17
    $region7: #{tpu_custom_call.1} parent=1 // loop_footer_branch
      %16 = sbr.rel target = $region3
    $region8: #{tpu_custom_call.1} parent=1 // loop_exit
      _
    %463 = vsyncpa [#allocation6], 1
    %s464 = scalar_lea.sflag [#allocation6], 1
    %465 = vsyncpa %s464, 1
    %466 = vsyncpa [#allocation9], 1
    %s467 = scalar_lea.sflag [#allocation9], 1
    %468 = vsyncpa %s467, 1
    %469 = vsyncpa [#allocation7], 1
    %s470 = scalar_lea.sflag [#allocation7], 1
    %471 = vsyncpa %s470, 1

</llo_original>
